<compile_context>
chip_gen: v7x
topology: tpu7x:2x2x1
jax: 0.10.0
libtpu: 0.0.40
codegen_flags: <defaults>
</compile_context>

<pallas_src>
import jax
import jax.numpy as jnp
from jax.experimental import pallas as pl
from jax.experimental.pallas import tpu as pltpu


def _softmax2d_kernel(x_ref, beta_ref, o_ref):
    # x_ref:    (NB, C, TS)  input tile (NB batch rows, full C, TS spatial cols)
    # beta_ref: (C, TS)      parameter tile (shared by every batch row)
    # o_ref:    (NB, C, TS)
    t = x_ref[...].astype(jnp.float32) * beta_ref[...].astype(jnp.float32)[None]

    # Numerically-stable softmax over the channel axis (axis=1). C is not on
    # the lane axis, so max/sum stay on the VPU/XLU sublane path.
    m = jnp.max(t, axis=1, keepdims=True)
    e = jnp.exp(t - m)
    s = jnp.sum(e, axis=1, keepdims=True)

    # EUP reciprocal (separate bundle slot) + one Newton refinement step
    # -> ~f32-exact 1/s; the per-element divide becomes a multiply.
    inv = pl.reciprocal(s, approx=True)
    inv = inv * (2.0 - s * inv)

    o_ref[...] = (e * inv).astype(o_ref.dtype)


def _choose_spatial_tile(wh, c, itemsize):
    """Largest lane-dense tile (multiple of 128) dividing `wh` whose per-block
    working set (double-buffered in/out + f32 temporaries) stays modest."""
    budget = 6 * 1024 * 1024                  # per-block working-set budget
    per_col = 6 * c * max(itemsize, 4)        # ~live bytes per spatial column
    cap = max(128, min(wh, budget // max(per_col, 1)))
    ts = (cap // 128) * 128
    while ts >= 128:
        if wh % ts == 0:
            return ts
        ts -= 128
    return wh   # wh is not a multiple of 128: full extent is always a legal block


def softmax2d_pallas(x, beta):
    """x: (N, C, W, H), beta: (C, W, H) -> (N, C, W, H)."""
    N, C, W, H = x.shape
    assert beta.shape == (C, W, H)
    WH = W * H
    itemsize = jnp.dtype(x.dtype).itemsize

    # Contiguous-dim merge (free layout plumbing): spatial goes on the lane axis.
    x3 = x.reshape(N, C, WH)
    b2 = beta.reshape(C, WH)

    if N * C * WH * itemsize <= (1 << 20):
        # Tiny problem: one block covering everything (grid-step overhead
        # would otherwise dominate).
        nb, ts = N, WH
    else:
        nb, ts = 1, _choose_spatial_tile(WH, C, itemsize)

    grid = (N // nb, pl.cdiv(WH, ts))

    # VMEM budget: double-buffered (in + out) blocks + beta block, with
    # headroom for the in-kernel f32 temporaries. Capped at 32 MiB so it is
    # safe on v5e / v6e / v7x alike.
    block_bytes = nb * C * ts * itemsize
    beta_bytes = C * ts * jnp.dtype(beta.dtype).itemsize
    vmem_need = 4 * block_bytes + 2 * beta_bytes + 4 * nb * C * ts * 4
    vmem_limit = int(min(max(2 * vmem_need, 8 << 20), 32 << 20))

    out3 = pl.pallas_call(
        _softmax2d_kernel,
        out_shape=jax.ShapeDtypeStruct((N, C, WH), x.dtype),
        grid_spec=pltpu.PrefetchScalarGridSpec(
            num_scalar_prefetch=0,
            grid=grid,
            in_specs=[
                pl.BlockSpec((nb, C, ts), lambda n, s: (n, 0, s)),
                pl.BlockSpec((C, ts), lambda n, s: (0, s)),
            ],
            out_specs=pl.BlockSpec((nb, C, ts), lambda n, s: (n, 0, s)),
        ),
        compiler_params=pltpu.CompilerParams(
            dimension_semantics=("parallel", "parallel"),
            vmem_limit_bytes=vmem_limit,
        ),
    )(x3, b2)

    return out3.reshape(N, C, W, H)


if __name__ == "__main__":
    # Small shapes consistent with the module: batch=2, channels=4, 16x16 spatial.
    N, C, W, H = 2, 4, 16, 16
    key = jax.random.PRNGKey(0)
    kx, kb = jax.random.split(key)

    x = jax.random.normal(kx, (N, C, W, H), dtype=jnp.float32)
    # nn.Parameter(torch.zeros((c, w, h)).uniform_(0, 1)) -> uniform in [0, 1)
    beta = jax.random.uniform(kb, (C, W, H), dtype=jnp.float32,
                              minval=0.0, maxval=1.0)

    out = softmax2d_pallas(x, beta)
    out = jax.block_until_ready(out)

    # Reference check in plain JAX (softmax over the channel dim).
    ref = jax.nn.softmax(x * beta[None], axis=1)
    assert out.shape == (N, C, W, H)
    assert jnp.allclose(out, ref, atol=1e-5, rtol=1e-5)

    print("KERNEL_OK")
</pallas_src>

<mosaic_0001>
module attributes {stable_mosaic.version = 11 : i64} {
  func.func @_softmax2d_kernel(%arg0: i32, %arg1: i32, %arg2: memref<2x4x256xf32, #tpu.memory_space<vmem>>, %arg3: memref<4x256xf32, #tpu.memory_space<vmem>>, %arg4: memref<2x4x256xf32, #tpu.memory_space<vmem>>) attributes {dimension_semantics = [#tpu.dimension_semantics<parallel>, #tpu.dimension_semantics<parallel>], iteration_bounds = array<i64: 1, 1>, scalar_prefetch = 0 : i64, scratch_operands = 0 : i64, tpu.core_type = #tpu.core_type<tc>, window_params = [{transform_indices = @transform_0, window_bounds = array<i64: 2, 4, 256>}, {transform_indices = @transform_1, window_bounds = array<i64: 4, 256>}, {transform_indices = @transform_2, window_bounds = array<i64: 2, 4, 256>}]} {
    %c0 = arith.constant 0 : index
    %c0_0 = arith.constant 0 : index
    %c0_1 = arith.constant 0 : index
    %0 = vector.load %arg2[%c0, %c0_0, %c0_1] : memref<2x4x256xf32, #tpu.memory_space<vmem>>, vector<2x4x256xf32>
    %c0_2 = arith.constant 0 : index
    %c0_3 = arith.constant 0 : index
    %1 = vector.load %arg3[%c0_2, %c0_3] : memref<4x256xf32, #tpu.memory_space<vmem>>, vector<4x256xf32>
    %2 = vector.shape_cast %1 : vector<4x256xf32> to vector<1x4x256xf32>
    %3 = vector.broadcast %2 : vector<1x4x256xf32> to vector<2x4x256xf32>
    %4 = arith.mulf %0, %3 : vector<2x4x256xf32>
    %cst = arith.constant dense<0xFF800000> : vector<2x256xf32>
    %5 = vector.multi_reduction <maximumf>, %4, %cst [1] : vector<2x4x256xf32> to vector<2x256xf32>
    %6 = vector.shape_cast %5 : vector<2x256xf32> to vector<2x1x256xf32>
    %7 = vector.broadcast %6 : vector<2x1x256xf32> to vector<2x4x256xf32>
    %8 = arith.subf %4, %7 : vector<2x4x256xf32>
    %9 = math.exp %8 : vector<2x4x256xf32>
    %cst_4 = arith.constant dense<0.000000e+00> : vector<2x256xf32>
    %10 = vector.multi_reduction <add>, %9, %cst_4 [1] : vector<2x4x256xf32> to vector<2x256xf32>
    %11 = vector.shape_cast %10 : vector<2x256xf32> to vector<2x1x256xf32>
    %12 = tpu.reciprocal %11 {approx = true} : vector<2x1x256xf32> -> vector<2x1x256xf32>
    %13 = arith.mulf %11, %12 : vector<2x1x256xf32>
    %cst_5 = arith.constant 2.000000e+00 : f32
    %14 = vector.broadcast %cst_5 : f32 to vector<2x1x256xf32>
    %15 = arith.subf %14, %13 : vector<2x1x256xf32>
    %16 = arith.mulf %12, %15 : vector<2x1x256xf32>
    %17 = vector.broadcast %16 : vector<2x1x256xf32> to vector<2x4x256xf32>
    %18 = arith.mulf %9, %17 : vector<2x4x256xf32>
    %c0_6 = arith.constant 0 : index
    %c0_7 = arith.constant 0 : index
    %c0_8 = arith.constant 0 : index
    %19 = vector.load %arg4[%c0_6, %c0_7, %c0_8] : memref<2x4x256xf32, #tpu.memory_space<vmem>>, vector<2x4x256xf32>
    tpu.vector_store %arg4[%c0_6, %c0_7, %c0_8], %18 {strides = array<i32>} : memref<2x4x256xf32, #tpu.memory_space<vmem>>, vector<2x4x256xf32>,
    return
  }
  func.func @transform_0(%arg0: i32, %arg1: i32) -> (i32, i32, i32) {
    %c0_i32 = arith.constant 0 : i32
    %c0_i32_0 = arith.constant 0 : i32
    return %arg0, %c0_i32, %arg1 : i32, i32, i32
  }
  func.func @transform_1(%arg0: i32, %arg1: i32) -> (i32, i32) {
    %c0_i32 = arith.constant 0 : i32
    %c0_i32_0 = arith.constant 0 : i32
    return %c0_i32, %arg1 : i32, i32
  }
  func.func @transform_2(%arg0: i32, %arg1: i32) -> (i32, i32, i32) {
    %c0_i32 = arith.constant 0 : i32
    %c0_i32_0 = arith.constant 0 : i32
    return %arg0, %c0_i32, %arg1 : i32, i32, i32
  }
}

</mosaic_0001>

<llo_original>
// kernel: tpu_custom_call.1
$region0: #{tpu_custom_call.1}
  #allocation0 [shape = 'u32[]', space=smem, size = 0x4, offset = 0x4, fixed_abs, tag = 'smem constant byte address 0x4 - core index']
  #allocation1 [shape = 'u32[144,128]{1,0:T(1,128)}', space=vmem, size = 0x12000, scoped, tag = 'internal scratch']
  %s0 = inlined_call_operand.hbm [shape: f32[2,4,256], index: 0, kind: input, shape index: {}]
  %s1 = inlined_call_operand.hbm [shape: f32[4,256], index: 1, kind: input, shape index: {}]
  %s2 = inlined_call_operand.hbm [shape: f32[2,4,256], index: 2, kind: output, shape index: {}]
  %s3 = sld [smem:[#allocation0]]
  $region26: #{tpu_custom_call.1} parent=0
    _
  %s5 = ssub.s32 1, %s3
  %s6 = scalar_select 0, %s5, %s3
  $region1: #{tpu_custom_call.1} parent=0
    #allocation2 [shape = 'u8[8192]{0}', space=vmem, size = 0x2000, scoped, tag = 'input window, operand 0, single buffered']
    #allocation3 [shape = 's32[1]{0}', space=sflag, size = 0x4, scoped, tag = 'scoped memory for tpu_custom_call.1']
    #allocation4 [shape = 's32[1]{0}', space=sflag, size = 0x4, scoped, tag = 'scoped memory for tpu_custom_call.1']
    #allocation5 [shape = 'u8[4096]{0}', space=vmem, size = 0x1000, scoped, tag = 'input window, operand 1, single buffered']
    #allocation6 [shape = 's32[1]{0}', space=sflag, size = 0x4, scoped, tag = 'scoped memory for tpu_custom_call.1']
    #allocation7 [shape = 'u8[8192]{0}', space=vmem, size = 0x2000, scoped, tag = 'output window, operand 0, single buffered']
    %7 = vsyncpa [#allocation3], 0
    %8 = vsyncpa [#allocation6], 0
    %9 = vsyncpa [#allocation4], 0
    // Predicated region
    $region2: #{tpu_custom_call.1} parent=1 // pred_check
      _
    $region3: #{tpu_custom_call.1} parent=1 // pred_check_branch
      %11 = sbr.rel (0) target = $region5
    $region4: #{tpu_custom_call.1} parent=1 // pred_region
      %s13 = ssub.s32 256, 256
      %14 = vsyncadd [#allocation3], %s13
      %s15 = sshll.u32 [#allocation2], 4
      %s16 = int_to_ptr.vmem [resolvable:$true] %s15
      %21 = dma.hbm_to_vmem [thread:$0]  %s0, 256, %s16, [#allocation3], 128, 128, 8
    $region5: #{tpu_custom_call.1} parent=1 // pred_fallthru
      _
    // Predicated region
    $region6: #{tpu_custom_call.1} parent=1 // pred_check
      _
    $region7: #{tpu_custom_call.1} parent=1 // pred_check_branch
      %23 = sbr.rel (0) target = $region9
    $region8: #{tpu_custom_call.1} parent=1 // pred_region
      %s25 = ssub.s32 128, 128
      %26 = vsyncadd [#allocation6], %s25
      %s28 = sshll.u32 [#allocation5], 4
      %s29 = int_to_ptr.vmem [resolvable:$true] %s28
      %31 = dma.hbm_to_vmem [thread:$0]  %s1, 128, %s29, [#allocation6]
    $region9: #{tpu_custom_call.1} parent=1 // pred_fallthru
      _
    // Predicated region
    $region10: #{tpu_custom_call.1} parent=1 // pred_check
      _
    $region11: #{tpu_custom_call.1} parent=1 // pred_check_branch
      %33 = sbr.rel (0) target = $region13
    $region12: #{tpu_custom_call.1} parent=1 // pred_region
      %34 = dma.done [#allocation3], 256
    $region13: #{tpu_custom_call.1} parent=1 // pred_fallthru
      _
    // Predicated region
    $region14: #{tpu_custom_call.1} parent=1 // pred_check
      _
    $region15: #{tpu_custom_call.1} parent=1 // pred_check_branch
      %36 = sbr.rel (0) target = $region17
    $region16: #{tpu_custom_call.1} parent=1 // pred_region
      %37 = dma.done [#allocation6], 128
    $region17: #{tpu_custom_call.1} parent=1 // pred_fallthru
      _
    %v38 = vld [vmem:[#allocation2] sm:$0xff]
    %v39 = vld [vmem:[#allocation2 + $0x8] sm:$0xff]
    %v40 = vld [vmem:[#allocation5] sm:$0xff]
    %v41 = vmul.f32 %v38, %v40
    %v42 = vmul.f32 %v39, %v40
    %v45 = vcombine.high %v41, %v41
    %v46 = vcombine.high %v42, %v42
    %vm49 = vcmask 1043456
    %v50 = vsel %vm49, %v41, -inf
    %v51 = vrot.slane %v50, 4
    %v52 = vmax.f32 %v50, %v51
    %v53 = vrot.slane %v52, 2
    %v54 = vmax.f32 %v52, %v53
    %v55 = vrot.slane %v54, 1
    %v56 = vmax.f32 %v54, %v55
    %v57 = vsel %vm49, %v45, -inf
    %v58 = vrot.slane %v57, 4
    %v59 = vmax.f32 %v57, %v58
    %v60 = vrot.slane %v59, 2
    %v61 = vmax.f32 %v59, %v60
    %v62 = vrot.slane %v61, 1
    %v63 = vmax.f32 %v61, %v62
    %v64 = vsel %vm49, %v42, -inf
    %v65 = vrot.slane %v64, 4
    %v66 = vmax.f32 %v64, %v65
    %v67 = vrot.slane %v66, 2
    %v68 = vmax.f32 %v66, %v67
    %v69 = vrot.slane %v68, 1
    %v70 = vmax.f32 %v68, %v69
    %v71 = vsel %vm49, %v46, -inf
    %v72 = vrot.slane %v71, 4
    %v73 = vmax.f32 %v71, %v72
    %v74 = vrot.slane %v73, 2
    %v75 = vmax.f32 %v73, %v74
    %v76 = vrot.slane %v75, 1
    %v77 = vmax.f32 %v75, %v76
    %v82 = vcombine.low %v56, %v63
    %v83 = vcombine.low %v70, %v77
    %v86 = vsub.f32 %v41, %v82
    %v87 = vsub.f32 %v42, %v83
    %v88 = vmul.f32 %v86, 1.442695
    %v89 = vpow.pop %v88
    %v90 = vmul.f32 %v87, 1.442695
    %v91 = vpow.pop %v90
    %v94 = vcombine.high %v89, %v89
    %v95 = vcombine.high %v91, %v91
    %v98 = vsel %vm49, %v89, 0.0
    %v99 = vrot.slane %v98, 4
    %v100 = vadd.f32 %v98, %v99
    %v101 = vrot.slane %v100, 2
    %v102 = vadd.f32 %v100, %v101
    %v103 = vrot.slane %v102, 1
    %v104 = vadd.f32 %v102, %v103
    %v105 = vsel %vm49, %v94, 0.0
    %v106 = vrot.slane %v105, 4
    %v107 = vadd.f32 %v105, %v106
    %v108 = vrot.slane %v107, 2
    %v109 = vadd.f32 %v107, %v108
    %v110 = vrot.slane %v109, 1
    %v111 = vadd.f32 %v109, %v110
    %v112 = vsel %vm49, %v91, 0.0
    %v113 = vrot.slane %v112, 4
    %v114 = vadd.f32 %v112, %v113
    %v115 = vrot.slane %v114, 2
    %v116 = vadd.f32 %v114, %v115
    %v117 = vrot.slane %v116, 1
    %v118 = vadd.f32 %v116, %v117
    %v119 = vsel %vm49, %v95, 0.0
    %v120 = vrot.slane %v119, 4
    %v121 = vadd.f32 %v119, %v120
    %v122 = vrot.slane %v121, 2
    %v123 = vadd.f32 %v121, %v122
    %v124 = vrot.slane %v123, 1
    %v125 = vadd.f32 %v123, %v124
    %v126 = vrcp.pop %v104
    %v127 = vrcp.pop %v111
    %v128 = vrcp.pop %v118
    %v129 = vrcp.pop %v125
    %v130 = vmul.f32 %v104, %v126
    %v131 = vmul.f32 %v111, %v127
    %v132 = vmul.f32 %v118, %v128
    %v133 = vmul.f32 %v125, %v129
    %v134 = vsub.f32 2.0, %v130
    %v135 = vsub.f32 2.0, %v131
    %v136 = vsub.f32 2.0, %v132
    %v137 = vsub.f32 2.0, %v133
    %v138 = vmul.f32 %v126, %v134
    %v139 = vmul.f32 %v127, %v135
    %v140 = vmul.f32 %v128, %v136
    %v141 = vmul.f32 %v129, %v137
    %v146 = vcombine.low %v138, %v139
    %v147 = vcombine.low %v140, %v141
    %v150 = vmul.f32 %v89, %v146
    %v151 = vmul.f32 %v91, %v147
    %152 = vst [vmem:[#allocation7] sm:$0xff] %v150
    %153 = vst [vmem:[#allocation7 + $0x8] sm:$0xff] %v151
    // Predicated region
    $region18: #{tpu_custom_call.1} parent=1 // pred_check
      _
    $region19: #{tpu_custom_call.1} parent=1 // pred_check_branch
      %155 = sbr.rel (0) target = $region21
    $region20: #{tpu_custom_call.1} parent=1 // pred_region
      %s157 = ssub.s32 256, 256
      %158 = vsyncadd [#allocation4], %s157
      %s159 = sshll.u32 [#allocation7], 4
      %s160 = int_to_ptr.vmem [resolvable:$true] %s159
      %165 = dma.vmem_to_hbm [thread:$0]  %s160, 256, %s2, [#allocation4], 128, 128, 8
    $region21: #{tpu_custom_call.1} parent=1 // pred_fallthru
      _
    // Predicated region
    $region22: #{tpu_custom_call.1} parent=1 // pred_check
      _
    $region23: #{tpu_custom_call.1} parent=1 // pred_check_branch
      %167 = sbr.rel (0) target = $region25
    $region24: #{tpu_custom_call.1} parent=1 // pred_region
      %168 = dma.done [#allocation4], 256
    $region25: #{tpu_custom_call.1} parent=1 // pred_fallthru
      _
    %169 = vsyncpa [#allocation3], 1
    %170 = vsyncpa [#allocation6], 1
    %171 = vsyncpa [#allocation4], 1

</llo_original>
